<compile_context>
chip_gen: v6e
topology: v6e:2x2x1
jax: 0.10.0
libtpu: 0.0.40
codegen_flags: <defaults>
</compile_context>

<pallas_src>
import functools

import jax
import jax.numpy as jnp
from jax import lax
from jax.experimental import pallas as pl
from jax.experimental.pallas import tpu as pltpu


def _round_up(v, m):
    return ((v + m - 1) // m) * m


def _dice_sums_kernel(x_ref, t_ref, inter_ref, go_ref, po_ref, *,
                      softmax, squared_pred, s_total, tile_s, cw,
                      tiles_per_part, ragged_tile_idx):
    """One (part, batch, spatial-tile) grid step.

    x_ref, t_ref : (C, tile_s) input blocks in their original dtype
    *_ref outputs: (C, 128) float32 resident accumulators
    """
    p = pl.program_id(0)
    s = pl.program_id(2)

    @pl.when(s == 0)
    def _():
        inter_ref[...] = jnp.zeros_like(inter_ref)
        go_ref[...] = jnp.zeros_like(go_ref)
        po_ref[...] = jnp.zeros_like(po_ref)

    C = x_ref.shape[0]
    n_chunks = tile_s // cw
    n_folds = cw // 128
    gidx = p * tiles_per_part + s          # global spatial tile index
    tile_start = gidx * tile_s             # global column of lane 0 of tile

    def fold128(a):
        # (C, cw) -> (C, 128) with static, lane-aligned VPU adds only.
        r = a[:, 0:128]
        for j in range(1, n_folds):
            r = r + a[:, j * 128:(j + 1) * 128]
        return r

    def run(masked):
        if masked:
            col0 = (jax.lax.broadcasted_iota(jnp.int32, (1, cw), 1)
                    + tile_start)

        def chunk_body(k, carry):
            inter_a, go_a, po_a = carry
            off = pl.multiple_of(k * cw, 128)
            x = x_ref[:, pl.ds(off, cw)].astype(jnp.float32)   # (C, cw)
            t = t_ref[:, pl.ds(off, cw)].astype(jnp.float32)   # (C, cw)
            if masked:
                valid = (col0 + off) < s_total
                t = jnp.where(valid, t, 0.0)
                if not softmax:
                    # x feeds the sums directly -> must be sanitized here
                    x = jnp.where(valid, x, 0.0)
            if softmax:
                # numerically stable softmax over the channel axis (axis 0)
                m = jnp.max(x, axis=0, keepdims=True)
                e = jnp.exp(x - m)
                x = e * pl.reciprocal(jnp.sum(e, axis=0, keepdims=True),
                                      approx=True)
                if masked:
                    # padded columns would otherwise contribute 1/C each
                    x = jnp.where(valid, x, 0.0)
            if squared_pred:
                t = t * t
                x = x * x
            return (inter_a + fold128(t * x),
                    go_a + fold128(t),
                    po_a + fold128(x))

        init = (jnp.zeros((C, 128), jnp.float32),
                jnp.zeros((C, 128), jnp.float32),
                jnp.zeros((C, 128), jnp.float32))
        ia, ga, pa = lax.fori_loop(0, n_chunks, chunk_body, init,
                                   unroll=min(8, n_chunks))
        # write the resident output blocks once per tile
        inter_ref[...] += ia
        go_ref[...] += ga
        po_ref[...] += pa

    if ragged_tile_idx is None:
        run(masked=False)
    else:
        is_ragged = gidx == ragged_tile_idx

        @pl.when(jnp.logical_not(is_ragged))
        def _():
            run(masked=False)

        @pl.when(is_ragged)
        def _():
            run(masked=True)


def dice_loss(inp, target, *, softmax=True, is_3d=True, squared_pred=False,
              smooth=1e-5, jaccard=False, tile_s=None, vmem_limit_bytes=None):
    """Pallas implementation of Diceloss.forward.

    inp, target: (N, C, D, H, W) if is_3d else (N, C, H, W); any float dtype
    (bf16 inputs are streamed as bf16 and cast to f32 per chunk in-kernel).
    Returns a scalar float32 loss.
    """
    expected_ndim = 5 if is_3d else 4
    assert inp.ndim == expected_ndim, f"expected {expected_ndim}-D input"
    assert target.shape == inp.shape, "input/target shape mismatch"

    N, C = int(inp.shape[0]), int(inp.shape[1])
    S = 1
    for d in inp.shape[2:]:
        S *= int(d)

    # Free reshape only — keep original dtypes, no pad, no astype HBM pass.
    x = jnp.reshape(inp, (N, C, S))
    t = jnp.reshape(target, (N, C, S))

    isz_x = jnp.dtype(inp.dtype).itemsize
    isz_t = jnp.dtype(target.dtype).itemsize
    cpad_x = _round_up(C, 8 * max(1, 4 // isz_x))   # sublane padding (dtype)
    cpad_t = _round_up(C, 8 * max(1, 4 // isz_t))
    cpad_f32 = _round_up(C, 8)

    # Per-generation VMEM capacity (v7x: 64 MiB, v5e/v6e: 128 MiB).
    try:
        vmem_cap = int(pltpu.get_tpu_info().vmem_capacity_bytes)
    except Exception:
        vmem_cap = 64 << 20
    if vmem_cap <= 0:
        vmem_cap = 64 << 20

    # Lane-chunk width: <=1024 lanes, shrunk for large C so one f32 chunk of
    # x + t stays at a comfortable vreg count.
    cw = max(128, min(1024, ((16 * 1024) // cpad_f32) // 128 * 128))
    cw = min(cw, _round_up(S, 128))
    if tile_s is not None:
        cw = min(cw, max(128, _round_up(int(tile_s), 128)))

    # Spatial tile: as large as the double-buffered input footprint allows
    # within ~45% of this generation's VMEM, never larger than the
    # (chunk-padded) spatial extent.
    lane_bytes = 2 * (cpad_x * isz_x + cpad_t * isz_t)   # 2 pipeline buffers
    input_budget = int(0.45 * vmem_cap)
    tile_budget = max(cw, (input_budget // lane_bytes) // cw * cw)
    tile_cap = _round_up(S, cw)
    if tile_s is None:
        tile_s = min(tile_budget, tile_cap, 65536)
    else:
        tile_s = min(max(int(tile_s), cw), tile_budget, tile_cap)
    tile_s = max(cw, (tile_s // cw) * cw)                # multiple of cw

    n_tiles = pl.cdiv(S, tile_s)
    ragged = (S % tile_s) != 0
    ragged_tile_idx = (S // tile_s) if ragged else None

    # 2-way spatial split so both v7x TensorCores get work when the batch
    # axis alone cannot be balanced (N odd / N == 1).
    parts = 2 if (N % 2 == 1 and n_tiles >= 2 and n_tiles % 2 == 0) else 1
    tiles_per_part = n_tiles // parts

    # VMEM limit sized from the actual footprint, clamped to the chip.
    if vmem_limit_bytes is None:
        need = lane_bytes * tile_s + 2 * 3 * cpad_f32 * 128 * 4
        vmem_limit_bytes = int(min(int(0.9 * vmem_cap),
                                   max(2 * need + (8 << 20), 32 << 20)))

    kernel = functools.partial(
        _dice_sums_kernel, softmax=softmax, squared_pred=squared_pred,
        s_total=S, tile_s=tile_s, cw=cw, tiles_per_part=tiles_per_part,
        ragged_tile_idx=ragged_tile_idx)

    in_spec = pl.BlockSpec((None, C, tile_s),
                           lambda p, n, s: (n, 0, p * tiles_per_part + s))
    acc_shape = jax.ShapeDtypeStruct((parts, N, C, 128), jnp.float32)
    acc_spec = pl.BlockSpec((None, None, C, 128), lambda p, n, s: (p, n, 0, 0))

    cost = pl.CostEstimate(
        flops=int(N * C * S * (10 if softmax else 4)),
        transcendentals=int(N * C * S) if softmax else 0,
        bytes_accessed=int(N * C * S * (isz_x + isz_t)
                           + 3 * parts * N * C * 128 * 4))

    inter_p, go_p, po_p = pl.pallas_call(
        kernel,
        out_shape=(acc_shape, acc_shape, acc_shape),
        grid_spec=pltpu.PrefetchScalarGridSpec(
            num_scalar_prefetch=0,
            grid=(parts, N, tiles_per_part),
            in_specs=[in_spec, in_spec],
            out_specs=(acc_spec, acc_spec, acc_spec),
        ),
        compiler_params=pltpu.CompilerParams(
            dimension_semantics=("parallel", "parallel", "arbitrary"),
            vmem_limit_bytes=vmem_limit_bytes),
        cost_estimate=cost,
    )(x, t)

    # Tiny final combine (parts x 128 lanes) in plain JAX glue.
    inter = jnp.sum(inter_p, axis=(0, 3))
    ground_o = jnp.sum(go_p, axis=(0, 3))
    pred_o = jnp.sum(po_p, axis=(0, 3))

    denominator = ground_o + pred_o
    if jaccard:
        denominator = 2.0 * (denominator - inter)
    f = 1.0 - (2.0 * inter + smooth) / (denominator + smooth)
    return jnp.mean(f)


def _reference_dice_loss(inp, target, *, softmax=True, is_3d=True,
                         squared_pred=False, smooth=1e-5, jaccard=False):
    """Pure-JAX reference mirroring the PyTorch module, for verification."""
    x = inp.astype(jnp.float32)
    t = target.astype(jnp.float32)
    if softmax:
        x = jax.nn.softmax(x, axis=1)
    reduce_axis = (2, 3, 4) if is_3d else (2, 3)
    if squared_pred:
        t = t ** 2
        x = x ** 2
    inter = jnp.sum(t * x, axis=reduce_axis)
    go = jnp.sum(t, axis=reduce_axis)
    po = jnp.sum(x, axis=reduce_axis)
    denom = go + po
    if jaccard:
        denom = 2.0 * (denom - inter)
    f = 1.0 - (2.0 * inter + smooth) / (denom + smooth)
    return jnp.mean(f)


if __name__ == "__main__":
    key = jax.random.PRNGKey(0)
    ks = jax.random.split(key, 8)
    C = 4

    # Case 1: 3D, softmax; N=2, spatial 4*8*8 = 256 (multiple of 128).
    N, D, H, W = 2, 4, 8, 8
    logits = jax.random.normal(ks[0], (N, C, D, H, W), dtype=jnp.float32)
    labels = jax.random.randint(ks[1], (N, D, H, W), 0, C)
    target = jax.nn.one_hot(labels, C, axis=1, dtype=jnp.float32)
    out1 = jax.block_until_ready(dice_loss(logits, target))
    ref1 = _reference_dice_loss(logits, target)
    assert jnp.allclose(out1, ref1, atol=2e-3, rtol=2e-3), (out1, ref1)

    # Case 2: ragged spatial size (3*7*9 = 189), softmax + squared_pred.
    D2, H2, W2 = 3, 7, 9
    logits2 = jax.random.normal(ks[2], (N, C, D2, H2, W2), dtype=jnp.float32)
    labels2 = jax.random.randint(ks[3], (N, D2, H2, W2), 0, C)
    target2 = jax.nn.one_hot(labels2, C, axis=1, dtype=jnp.float32)
    out2 = jax.block_until_ready(
        dice_loss(logits2, target2, squared_pred=True))
    ref2 = _reference_dice_loss(logits2, target2, squared_pred=True)
    assert jnp.allclose(out2, ref2, atol=2e-3, rtol=2e-3), (out2, ref2)

    # Case 3: 2D mode, bf16 probabilities (no softmax), jaccard, ragged size.
    H3, W3 = 17, 13
    probs3 = jax.nn.softmax(
        jax.random.normal(ks[4], (N, C, H3, W3), dtype=jnp.float32), axis=1
    ).astype(jnp.bfloat16)
    labels3 = jax.random.randint(ks[5], (N, H3, W3), 0, C)
    target3 = jax.nn.one_hot(labels3, C, axis=1, dtype=jnp.bfloat16)
    out3 = jax.block_until_ready(
        dice_loss(probs3, target3, softmax=False, is_3d=False, jaccard=True))
    ref3 = _reference_dice_loss(probs3, target3, softmax=False, is_3d=False,
                                jaccard=True)
    assert jnp.allclose(out3, ref3, atol=2e-3, rtol=2e-3), (out3, ref3)

    # Case 4: N=1, 2D, softmax, multiple tiles (tile_s=512, S=25*40=1000)
    # -> exercises the 2-way spatial core split + ragged last-tile masking.
    H4, W4 = 25, 40
    logits4 = jax.random.normal(ks[6], (1, C, H4, W4), dtype=jnp.float32)
    labels4 = jax.random.randint(ks[7], (1, H4, W4), 0, C)
    target4 = jax.nn.one_hot(labels4, C, axis=1, dtype=jnp.float32)
    out4 = jax.block_until_ready(
        dice_loss(logits4, target4, is_3d=False, tile_s=512))
    ref4 = _reference_dice_loss(logits4, target4, is_3d=False)
    assert jnp.allclose(out4, ref4, atol=2e-3, rtol=2e-3), (out4, ref4)

    print("KERNEL_OK")
</pallas_src>

<mosaic_0001>
module attributes {stable_mosaic.version = 11 : i64} {
  func.func @_dice_sums_kernel(%arg0: i32, %arg1: i32, %arg2: i32, %arg3: memref<1x4x256xf32, #tpu.memory_space<vmem>>, %arg4: memref<1x4x256xf32, #tpu.memory_space<vmem>>, %arg5: memref<1x1x4x128xf32, #tpu.memory_space<vmem>>, %arg6: memref<1x1x4x128xf32, #tpu.memory_space<vmem>>, %arg7: memref<1x1x4x128xf32, #tpu.memory_space<vmem>>) attributes {dimension_semantics = [#tpu.dimension_semantics<parallel>, #tpu.dimension_semantics<parallel>, #tpu.dimension_semantics<arbitrary>], iteration_bounds = array<i64: 1, 2, 1>, scalar_prefetch = 0 : i64, scratch_operands = 0 : i64, tpu.core_type = #tpu.core_type<tc>, window_params = [{transform_indices = @transform_0, window_bounds = array<i64: 1, 4, 256>}, {transform_indices = @transform_1, window_bounds = array<i64: 1, 4, 256>}, {transform_indices = @transform_2, window_bounds = array<i64: 1, 1, 4, 128>}, {transform_indices = @transform_3, window_bounds = array<i64: 1, 1, 4, 128>}, {transform_indices = @transform_4, window_bounds = array<i64: 1, 1, 4, 128>}]} {
    %c0_i32 = arith.constant 0 : i32
    %0 = arith.cmpi eq, %arg2, %c0_i32 : i32
    %1 = arith.extui %0 : i1 to i32
    %c0_i32_0 = arith.constant 0 : i32
    %2 = arith.cmpi ne, %1, %c0_i32_0 : i32
    scf.if %2 {
      %cst_33 = arith.constant 0.000000e+00 : f32
      %55 = vector.broadcast %cst_33 : f32 to vector<4x128xf32>
      %c0_34 = arith.constant 0 : index
      %c0_35 = arith.constant 0 : index
      %c0_36 = arith.constant 0 : index
      %c0_37 = arith.constant 0 : index
      %56 = vector.load %arg5[%c0_34, %c0_35, %c0_36, %c0_37] : memref<1x1x4x128xf32, #tpu.memory_space<vmem>>, vector<1x1x4x128xf32>
      %57 = vector.shape_cast %56 : vector<1x1x4x128xf32> to vector<4x128xf32>
      %58 = vector.shape_cast %55 : vector<4x128xf32> to vector<1x1x4x128xf32>
      tpu.vector_store %arg5[%c0_34, %c0_35, %c0_36, %c0_37], %58 {strides = array<i32>} : memref<1x1x4x128xf32, #tpu.memory_space<vmem>>, vector<1x1x4x128xf32>,
      %cst_38 = arith.constant 0.000000e+00 : f32
      %59 = vector.broadcast %cst_38 : f32 to vector<4x128xf32>
      %c0_39 = arith.constant 0 : index
      %c0_40 = arith.constant 0 : index
      %c0_41 = arith.constant 0 : index
      %c0_42 = arith.constant 0 : index
      %60 = vector.load %arg6[%c0_39, %c0_40, %c0_41, %c0_42] : memref<1x1x4x128xf32, #tpu.memory_space<vmem>>, vector<1x1x4x128xf32>
      %61 = vector.shape_cast %60 : vector<1x1x4x128xf32> to vector<4x128xf32>
      %62 = vector.shape_cast %59 : vector<4x128xf32> to vector<1x1x4x128xf32>
      tpu.vector_store %arg6[%c0_39, %c0_40, %c0_41, %c0_42], %62 {strides = array<i32>} : memref<1x1x4x128xf32, #tpu.memory_space<vmem>>, vector<1x1x4x128xf32>,
      %cst_43 = arith.constant 0.000000e+00 : f32
      %63 = vector.broadcast %cst_43 : f32 to vector<4x128xf32>
      %c0_44 = arith.constant 0 : index
      %c0_45 = arith.constant 0 : index
      %c0_46 = arith.constant 0 : index
      %c0_47 = arith.constant 0 : index
      %64 = vector.load %arg7[%c0_44, %c0_45, %c0_46, %c0_47] : memref<1x1x4x128xf32, #tpu.memory_space<vmem>>, vector<1x1x4x128xf32>
      %65 = vector.shape_cast %64 : vector<1x1x4x128xf32> to vector<4x128xf32>
      %66 = vector.shape_cast %63 : vector<4x128xf32> to vector<1x1x4x128xf32>
      tpu.vector_store %arg7[%c0_44, %c0_45, %c0_46, %c0_47], %66 {strides = array<i32>} : memref<1x1x4x128xf32, #tpu.memory_space<vmem>>, vector<1x1x4x128xf32>,
    } else {
    }
    %cst = arith.constant 0.000000e+00 : f32
    %3 = vector.broadcast %cst : f32 to vector<4x128xf32>
    %cst_1 = arith.constant 0.000000e+00 : f32
    %4 = vector.broadcast %cst_1 : f32 to vector<4x128xf32>
    %cst_2 = arith.constant 0.000000e+00 : f32
    %5 = vector.broadcast %cst_2 : f32 to vector<4x128xf32>
    %c0_i32_3 = arith.constant 0 : i32
    %c256_i32 = arith.constant 256 : i32
    %6 = arith.muli %c0_i32_3, %c256_i32 : i32
    %7 = tpu.assume_multiple %6, 128 : i32
    %c0 = arith.constant 0 : index
    %c0_4 = arith.constant 0 : index
    %8 = arith.index_cast %7 : i32 to index
    %9 = vector.load %arg3[%c0, %c0_4, %8] : memref<1x4x256xf32, #tpu.memory_space<vmem>>, vector<1x4x256xf32>
    %10 = vector.shape_cast %9 : vector<1x4x256xf32> to vector<4x256xf32>
    %c0_5 = arith.constant 0 : index
    %c0_6 = arith.constant 0 : index
    %11 = arith.index_cast %7 : i32 to index
    %12 = vector.load %arg4[%c0_5, %c0_6, %11] : memref<1x4x256xf32, #tpu.memory_space<vmem>>, vector<1x4x256xf32>
    %13 = vector.shape_cast %12 : vector<1x4x256xf32> to vector<4x256xf32>
    %cst_7 = arith.constant dense<0xFF800000> : vector<256xf32>
    %14 = vector.multi_reduction <maximumf>, %10, %cst_7 [0] : vector<4x256xf32> to vector<256xf32>
    %15 = vector.shape_cast %14 : vector<256xf32> to vector<1x256xf32>
    %16 = vector.broadcast %15 : vector<1x256xf32> to vector<4x256xf32>
    %17 = arith.subf %10, %16 : vector<4x256xf32>
    %18 = math.exp %17 : vector<4x256xf32>
    %cst_8 = arith.constant dense<0.000000e+00> : vector<256xf32>
    %19 = vector.multi_reduction <add>, %18, %cst_8 [0] : vector<4x256xf32> to vector<256xf32>
    %20 = vector.shape_cast %19 : vector<256xf32> to vector<1x256xf32>
    %21 = tpu.reciprocal %20 {approx = true} : vector<1x256xf32> -> vector<1x256xf32>
    %22 = vector.broadcast %21 : vector<1x256xf32> to vector<4x256xf32>
    %23 = arith.mulf %18, %22 : vector<4x256xf32>
    %24 = arith.mulf %13, %23 : vector<4x256xf32>
    %25 = vector.extract_strided_slice %24 {offsets = [0, 0], sizes = [4, 128], strides = [1, 1]} : vector<4x256xf32> to vector<4x128xf32>
    %26 = vector.extract_strided_slice %24 {offsets = [0, 128], sizes = [4, 128], strides = [1, 1]} : vector<4x256xf32> to vector<4x128xf32>
    %27 = arith.addf %25, %26 : vector<4x128xf32>
    %28 = arith.addf %3, %27 : vector<4x128xf32>
    %29 = vector.extract_strided_slice %13 {offsets = [0, 0], sizes = [4, 128], strides = [1, 1]} : vector<4x256xf32> to vector<4x128xf32>
    %30 = vector.extract_strided_slice %13 {offsets = [0, 128], sizes = [4, 128], strides = [1, 1]} : vector<4x256xf32> to vector<4x128xf32>
    %31 = arith.addf %29, %30 : vector<4x128xf32>
    %32 = arith.addf %4, %31 : vector<4x128xf32>
    %33 = vector.extract_strided_slice %23 {offsets = [0, 0], sizes = [4, 128], strides = [1, 1]} : vector<4x256xf32> to vector<4x128xf32>
    %34 = vector.extract_strided_slice %23 {offsets = [0, 128], sizes = [4, 128], strides = [1, 1]} : vector<4x256xf32> to vector<4x128xf32>
    %35 = arith.addf %33, %34 : vector<4x128xf32>
    %36 = arith.addf %5, %35 : vector<4x128xf32>
    %c1_i32 = arith.constant 1 : i32
    %c0_9 = arith.constant 0 : index
    %c0_10 = arith.constant 0 : index
    %c0_11 = arith.constant 0 : index
    %c0_12 = arith.constant 0 : index
    %37 = vector.load %arg5[%c0_9, %c0_10, %c0_11, %c0_12] : memref<1x1x4x128xf32, #tpu.memory_space<vmem>>, vector<1x1x4x128xf32>
    %38 = vector.shape_cast %37 : vector<1x1x4x128xf32> to vector<4x128xf32>
    %39 = arith.addf %38, %28 : vector<4x128xf32>
    %c0_13 = arith.constant 0 : index
    %c0_14 = arith.constant 0 : index
    %c0_15 = arith.constant 0 : index
    %c0_16 = arith.constant 0 : index
    %40 = vector.load %arg5[%c0_13, %c0_14, %c0_15, %c0_16] : memref<1x1x4x128xf32, #tpu.memory_space<vmem>>, vector<1x1x4x128xf32>
    %41 = vector.shape_cast %40 : vector<1x1x4x128xf32> to vector<4x128xf32>
    %42 = vector.shape_cast %39 : vector<4x128xf32> to vector<1x1x4x128xf32>
    tpu.vector_store %arg5[%c0_13, %c0_14, %c0_15, %c0_16], %42 {strides = array<i32>} : memref<1x1x4x128xf32, #tpu.memory_space<vmem>>, vector<1x1x4x128xf32>,
    %c0_17 = arith.constant 0 : index
    %c0_18 = arith.constant 0 : index
    %c0_19 = arith.constant 0 : index
    %c0_20 = arith.constant 0 : index
    %43 = vector.load %arg6[%c0_17, %c0_18, %c0_19, %c0_20] : memref<1x1x4x128xf32, #tpu.memory_space<vmem>>, vector<1x1x4x128xf32>
    %44 = vector.shape_cast %43 : vector<1x1x4x128xf32> to vector<4x128xf32>
    %45 = arith.addf %44, %32 : vector<4x128xf32>
    %c0_21 = arith.constant 0 : index
    %c0_22 = arith.constant 0 : index
    %c0_23 = arith.constant 0 : index
    %c0_24 = arith.constant 0 : index
    %46 = vector.load %arg6[%c0_21, %c0_22, %c0_23, %c0_24] : memref<1x1x4x128xf32, #tpu.memory_space<vmem>>, vector<1x1x4x128xf32>
    %47 = vector.shape_cast %46 : vector<1x1x4x128xf32> to vector<4x128xf32>
    %48 = vector.shape_cast %45 : vector<4x128xf32> to vector<1x1x4x128xf32>
    tpu.vector_store %arg6[%c0_21, %c0_22, %c0_23, %c0_24], %48 {strides = array<i32>} : memref<1x1x4x128xf32, #tpu.memory_space<vmem>>, vector<1x1x4x128xf32>,
    %c0_25 = arith.constant 0 : index
    %c0_26 = arith.constant 0 : index
    %c0_27 = arith.constant 0 : index
    %c0_28 = arith.constant 0 : index
    %49 = vector.load %arg7[%c0_25, %c0_26, %c0_27, %c0_28] : memref<1x1x4x128xf32, #tpu.memory_space<vmem>>, vector<1x1x4x128xf32>
    %50 = vector.shape_cast %49 : vector<1x1x4x128xf32> to vector<4x128xf32>
    %51 = arith.addf %50, %36 : vector<4x128xf32>
    %c0_29 = arith.constant 0 : index
    %c0_30 = arith.constant 0 : index
    %c0_31 = arith.constant 0 : index
    %c0_32 = arith.constant 0 : index
    %52 = vector.load %arg7[%c0_29, %c0_30, %c0_31, %c0_32] : memref<1x1x4x128xf32, #tpu.memory_space<vmem>>, vector<1x1x4x128xf32>
    %53 = vector.shape_cast %52 : vector<1x1x4x128xf32> to vector<4x128xf32>
    %54 = vector.shape_cast %51 : vector<4x128xf32> to vector<1x1x4x128xf32>
    tpu.vector_store %arg7[%c0_29, %c0_30, %c0_31, %c0_32], %54 {strides = array<i32>} : memref<1x1x4x128xf32, #tpu.memory_space<vmem>>, vector<1x1x4x128xf32>,
    return
  }
  func.func @transform_0(%arg0: i32, %arg1: i32, %arg2: i32) -> (i32, i32, i32) {
    %c1_i32 = arith.constant 1 : i32
    %0 = arith.muli %arg0, %c1_i32 : i32
    %1 = arith.addi %0, %arg2 : i32
    %c0_i32 = arith.constant 0 : i32
    %c0_i32_0 = arith.constant 0 : i32
    return %arg1, %c0_i32, %1 : i32, i32, i32
  }
  func.func @transform_1(%arg0: i32, %arg1: i32, %arg2: i32) -> (i32, i32, i32) {
    %c1_i32 = arith.constant 1 : i32
    %0 = arith.muli %arg0, %c1_i32 : i32
    %1 = arith.addi %0, %arg2 : i32
    %c0_i32 = arith.constant 0 : i32
    %c0_i32_0 = arith.constant 0 : i32
    return %arg1, %c0_i32, %1 : i32, i32, i32
  }
  func.func @transform_2(%arg0: i32, %arg1: i32, %arg2: i32) -> (i32, i32, i32, i32) {
    %c0_i32 = arith.constant 0 : i32
    %c0_i32_0 = arith.constant 0 : i32
    %c0_i32_1 = arith.constant 0 : i32
    return %arg0, %arg1, %c0_i32, %c0_i32_0 : i32, i32, i32, i32
  }
  func.func @transform_3(%arg0: i32, %arg1: i32, %arg2: i32) -> (i32, i32, i32, i32) {
    %c0_i32 = arith.constant 0 : i32
    %c0_i32_0 = arith.constant 0 : i32
    %c0_i32_1 = arith.constant 0 : i32
    return %arg0, %arg1, %c0_i32, %c0_i32_0 : i32, i32, i32, i32
  }
  func.func @transform_4(%arg0: i32, %arg1: i32, %arg2: i32) -> (i32, i32, i32, i32) {
    %c0_i32 = arith.constant 0 : i32
    %c0_i32_0 = arith.constant 0 : i32
    %c0_i32_1 = arith.constant 0 : i32
    return %arg0, %arg1, %c0_i32, %c0_i32_0 : i32, i32, i32, i32
  }
}

</mosaic_0001>

<llo_original>
// kernel: tpu_custom_call.1
$region0: #{tpu_custom_call.1}
  #allocation0 [shape = 'u32[]', space=smem, size = 0x4, offset = 0x4, fixed_abs, tag = 'smem constant byte address 0x4 - core index']
  #allocation1 [shape = 'u32[144,128]{1,0:T(1,128)}', space=vmem, size = 0x12000, scoped, tag = 'internal scratch']
  %s0 = inlined_call_operand.hbm [shape: f32[2,4,256], index: 0, kind: input, shape index: {}]
  %s1 = inlined_call_operand.hbm [shape: f32[2,4,256], index: 1, kind: input, shape index: {}]
  %s2 = inlined_call_operand.hbm [shape: f32[1,2,4,128], index: 2, kind: output, shape index: {0}]
  %s3 = inlined_call_operand.hbm [shape: f32[1,2,4,128], index: 3, kind: output, shape index: {1}]
  %s4 = inlined_call_operand.hbm [shape: f32[1,2,4,128], index: 4, kind: output, shape index: {2}]
  %5 = xla_tuple %s2, %s3, %s4
  %s6 = sld [smem:[#allocation0]]
  $region69: #{tpu_custom_call.1} parent=0
    _
  %s8 = ssub.s32 1, %s6
  %s9 = scalar_select 0, %s8, %s6
  $region1: #{tpu_custom_call.1} parent=0
    #allocation2 [shape = 'u8[8192]{0}', space=vmem, size = 0x2000, scoped, tag = 'input window, operand 0']
    #allocation3 [shape = 's32[2]{0}', space=sflag, size = 0x8, scoped, tag = 'scoped memory for tpu_custom_call.1']
    #allocation4 [shape = 's32[2]{0}', space=sflag, size = 0x8, scoped, tag = 'scoped memory for tpu_custom_call.1']
    #allocation5 [shape = 'u8[8192]{0}', space=vmem, size = 0x2000, scoped, tag = 'input window, operand 1']
    #allocation6 [shape = 's32[2]{0}', space=sflag, size = 0x8, scoped, tag = 'scoped memory for tpu_custom_call.1']
    #allocation7 [shape = 'u8[4096]{0}', space=vmem, size = 0x1000, scoped, tag = 'output window, operand 0']
    #allocation8 [shape = 'u8[4096]{0}', space=vmem, size = 0x1000, scoped, tag = 'output window, operand 1']
    #allocation9 [shape = 's32[2]{0}', space=sflag, size = 0x8, scoped, tag = 'scoped memory for tpu_custom_call.1']
    #allocation10 [shape = 'u8[4096]{0}', space=vmem, size = 0x1000, scoped, tag = 'output window, operand 2']
    %10 = vsyncpa [#allocation3], 0
    %s11 = scalar_lea.sflag [#allocation3], 1
    %12 = vsyncpa %s11, 0
    %13 = vsyncpa [#allocation6], 0
    %s14 = scalar_lea.sflag [#allocation6], 1
    %15 = vsyncpa %s14, 0
    %16 = vsyncpa [#allocation4], 0
    %s17 = scalar_lea.sflag [#allocation4], 1
    %18 = vsyncpa %s17, 0
    %19 = vsyncpa [#allocation9], 0
    %s20 = scalar_lea.sflag [#allocation9], 1
    %21 = vsyncpa %s20, 0
    loop: start=0, step=1, limit=4
    $region2: #{tpu_custom_call.1} parent=1 // loop_pre_header
      _
    $region3: #{tpu_custom_call.1} parent=1 // loop_header
      %s23 = sphi 0, %s27
      %p24 = scmp.ge.s32.totalorder %s23, 4
      %s30 = sphi 0, %s49
      %s31 = sphi 0, %s45
      %s32 = sphi 0, %s41
      %s33 = sphi 0, %s30
      %s34 = sphi 0, %s31
      %s35 = sphi 0, %s32
      %s36 = sphi 0, %s33
      %s37 = sphi 0, %s34
      %s38 = sphi 0, %s35
      %s56 = sphi 0, %s58
      %s59 = sphi 0, %s56
      %s60 = sphi 0, %s59
      %s76 = sphi 0, %s60
      %s86 = sphi 0, %s88
      %s89 = sphi 0, %s86
      %s90 = sphi 0, %s89
      %s106 = sphi 0, %s90
      %s114 = sphi 0, %s116
      %s117 = sphi 0, %s114
      %s118 = sphi 0, %s117
      %s134 = sphi 0, %s118
      %s142 = sphi 0, %s144
      %s145 = sphi 0, %s142
      %s146 = sphi 0, %s145
      %s162 = sphi 0, %s146
      %s170 = sphi 0, %s172
      %s173 = sphi 0, %s170
      %s174 = sphi 0, %s173
      %s190 = sphi 0, %s174
    $region4: #{tpu_custom_call.1} parent=1 // loop_header_branch
      %26 = sbr.rel (%p24) target = $region8
    $region5: #{tpu_custom_call.1} parent=1 // loop_body
      %s28 = ssub.s32 %s23, 1
      %s29 = ssub.s32 %s23, 2
      %s39 = sadd.s32 1, %s32
      %p40 = scmp.ge.s32.totalorder %s39, 1
      %s41 = scalar_select %p40, 0, %s39
      %s42 = sadd.s32 1, %s31
      %s43 = scalar_select %p40, %s42, %s31
      %p44 = scmp.ge.s32.totalorder %s43, 2
      %s45 = scalar_select %p44, 0, %s43
      %s46 = sadd.s32 1, %s30
      %s47 = scalar_select %p44, %s46, %s30
      %p48 = scmp.ge.s32.totalorder %s47, 1
      %s49 = scalar_select %p48, 0, %s47
      %s50 = sadd.s32 %s30, %s32
      %s51 = sadd.s32 %s49, %s41
      %s52 = ssub.s32 %s31, %s45
      %s53 = ssub.s32 %s50, %s51
      %s54 = sor.u32 %s52, %s53
      %p55 = scmp.eq.s32.totalorder %s54, 0
      %s57 = sadd.s32 %s56, 1
      %s58 = scalar_select %p55, %s56, %s57
      %p61 = pneg %p55
      %p62 = scmp.eq.s32.totalorder %s23, 1
      %p63 = por %p61, %p62
      %p64 = scmp.ne.s32.totalorder %s56, %s59
      %p65 = scmp.eq.s32.totalorder %s23, 0
      %p66 = por %p64, %p65
      %p67 = scmp.ne.s32.totalorder %s56, %s59
      %p68 = scmp.eq.s32.totalorder %s28, 1
      %p69 = por %p67, %p68
      %p70 = scmp.ne.s32.totalorder %s59, %s60
      %p71 = scmp.eq.s32.totalorder %s28, 0
      %p72 = por %p70, %p71
      %p73 = scmp.ne.s32.totalorder %s59, %s60
      %p74 = scmp.eq.s32.totalorder %s29, 1
      %p75 = por %p73, %p74
      %p77 = scmp.ne.s32.totalorder %s60, %s76
      %p78 = scmp.eq.s32.totalorder %s29, 0
      %p79 = por %p77, %p78
      %s80 = sadd.s32 %s30, %s32
      %s81 = sadd.s32 %s49, %s41
      %s82 = ssub.s32 %s31, %s45
      %s83 = ssub.s32 %s80, %s81
      %s84 = sor.u32 %s82, %s83
      %p85 = scmp.eq.s32.totalorder %s84, 0
      %s87 = sadd.s32 %s86, 1
      %s88 = scalar_select %p85, %s86, %s87
      %p91 = pneg %p85
      %p92 = scmp.eq.s32.totalorder %s23, 1
      %p93 = por %p91, %p92
      %p94 = scmp.ne.s32.totalorder %s86, %s89
      %p95 = scmp.eq.s32.totalorder %s23, 0
      %p96 = por %p94, %p95
      %p97 = scmp.ne.s32.totalorder %s86, %s89
      %p98 = scmp.eq.s32.totalorder %s28, 1
      %p99 = por %p97, %p98
      %p100 = scmp.ne.s32.totalorder %s89, %s90
      %p101 = scmp.eq.s32.totalorder %s28, 0
      %p102 = por %p100, %p101
      %p103 = scmp.ne.s32.totalorder %s89, %s90
      %p104 = scmp.eq.s32.totalorder %s29, 1
      %p105 = por %p103, %p104
      %p107 = scmp.ne.s32.totalorder %s90, %s106
      %p108 = scmp.eq.s32.totalorder %s29, 0
      %p109 = por %p107, %p108
      %s110 = ssub.s32 %s30, %s49
      %s111 = ssub.s32 %s31, %s45
      %s112 = sor.u32 %s110, %s111
      %p113 = scmp.eq.s32.totalorder %s112, 0
      %s115 = sadd.s32 %s114, 1
      %s116 = scalar_select %p113, %s114, %s115
      %p119 = pneg %p113
      %p120 = scmp.eq.s32.totalorder %s23, 1
      %p121 = por %p119, %p120
      %p122 = scmp.ne.s32.totalorder %s114, %s117
      %p123 = scmp.eq.s32.totalorder %s23, 0
      %p124 = por %p122, %p123
      %p125 = scmp.ne.s32.totalorder %s114, %s117
      %p126 = scmp.eq.s32.totalorder %s28, 1
      %p127 = por %p125, %p126
      %p128 = scmp.ne.s32.totalorder %s117, %s118
      %p129 = scmp.eq.s32.totalorder %s28, 0
      %p130 = por %p128, %p129
      %p131 = scmp.ne.s32.totalorder %s117, %s118
      %p132 = scmp.eq.s32.totalorder %s29, 1
      %p133 = por %p131, %p132
      %p135 = scmp.ne.s32.totalorder %s118, %s134
      %p136 = scmp.eq.s32.totalorder %s29, 0
      %p137 = por %p135, %p136
      %s138 = ssub.s32 %s30, %s49
      %s139 = ssub.s32 %s31, %s45
      %s140 = sor.u32 %s138, %s139
      %p141 = scmp.eq.s32.totalorder %s140, 0
      %s143 = sadd.s32 %s142, 1
      %s144 = scalar_select %p141, %s142, %s143
      %p147 = pneg %p141
      %p148 = scmp.eq.s32.totalorder %s23, 1
      %p149 = por %p147, %p148
      %p150 = scmp.ne.s32.totalorder %s142, %s145
      %p151 = scmp.eq.s32.totalorder %s23, 0
      %p152 = por %p150, %p151
      %p153 = scmp.ne.s32.totalorder %s142, %s145
      %p154 = scmp.eq.s32.totalorder %s28, 1
      %p155 = por %p153, %p154
      %p156 = scmp.ne.s32.totalorder %s145, %s146
      %p157 = scmp.eq.s32.totalorder %s28, 0
      %p158 = por %p156, %p157
      %p159 = scmp.ne.s32.totalorder %s145, %s146
      %p160 = scmp.eq.s32.totalorder %s29, 1
      %p161 = por %p159, %p160
      %p163 = scmp.ne.s32.totalorder %s146, %s162
      %p164 = scmp.eq.s32.totalorder %s29, 0
      %p165 = por %p163, %p164
      %s166 = ssub.s32 %s30, %s49
      %s167 = ssub.s32 %s31, %s45
      %s168 = sor.u32 %s166, %s167
      %p169 = scmp.eq.s32.totalorder %s168, 0
      %s171 = sadd.s32 %s170, 1
      %s172 = scalar_select %p169, %s170, %s171
      %p175 = pneg %p169
      %p176 = scmp.eq.s32.totalorder %s23, 1
      %p177 = por %p175, %p176
      %p178 = scmp.ne.s32.totalorder %s170, %s173
      %p179 = scmp.eq.s32.totalorder %s23, 0
      %p180 = por %p178, %p179
      %p181 = scmp.ne.s32.totalorder %s170, %s173
      %p182 = scmp.eq.s32.totalorder %s28, 1
      %p183 = por %p181, %p182
      %p184 = scmp.ne.s32.totalorder %s173, %s174
      %p185 = scmp.eq.s32.totalorder %s28, 0
      %p186 = por %p184, %p185
      %p187 = scmp.ne.s32.totalorder %s173, %s174
      %p188 = scmp.eq.s32.totalorder %s29, 1
      %p189 = por %p187, %p188
      %p191 = scmp.ne.s32.totalorder %s174, %s190
      %p192 = scmp.eq.s32.totalorder %s29, 0
      %p193 = por %p191, %p192
      %p194 = scmp.le.s32.totalorder 1, %s23
      %p195 = scmp.lt.s32.totalorder %s23, 3
      %p196 = pnand %p194, %p195
      %p197 = pneg %p196
      // Predicated region
      $region9: #{tpu_custom_call.1} parent=5 // pred_check
        _
      $region10: #{tpu_custom_call.1} parent=5 // pred_check_branch
        %199 = sbr.rel (%p196) target = $region12
      $region11: #{tpu_custom_call.1} parent=5 // pred_region
        %s200 = ssub.s32 %s23, 1
      $region12: #{tpu_custom_call.1} parent=5 // pred_fallthru
        _
      %p201 = scmp.lt.s32.totalorder %s23, 2
      // Predicated region
      $region13: #{tpu_custom_call.1} parent=5 // pred_check
        %p202 = pneg %p201
      $region14: #{tpu_custom_call.1} parent=5 // pred_check_branch
        %204 = sbr.rel (%p202) target = $region16
      $region15: #{tpu_custom_call.1} parent=5 // pred_region
        // Predicated region
        $region17: #{tpu_custom_call.1} parent=15 // pred_check
          %p205 = pneg %p66
        $region18: #{tpu_custom_call.1} parent=15 // pred_check_branch
          %207 = sbr.rel (%p205) target = $region20
        $region19: #{tpu_custom_call.1} parent=15 // pred_region
          %s208 = sand.u32 %s56, 1
          %s209 = scalar_lea.sflag [#allocation3], %s208
          %s210 = sand.u32 %s56, 1
          %s211 = smul.addr %s210, 8
          %s212 = scalar_lea.vmem [#allocation2], %s211
          %s213 = sadd.s32 %s30, %s32
          %s214 = smul.u32 2, %s213
          %s216 = ssub.s32 128, 128
          %217 = vsyncadd %s209, %s216
          %s218 = smul.addr %s31, 2
          %s219 = sadd.s32 %s214, %s218
          %s220 = smul.addr %s219, 64
          %s221 = scalar_lea.hbm %s0, %s220
          %s223 = sshll.u32 %s212, 4
          %s224 = int_to_ptr.vmem [resolvable:$true] %s223
          %226 = dma.hbm_to_vmem [thread:$0]  %s221, 128, %s224, %s209
        $region20: #{tpu_custom_call.1} parent=15 // pred_fallthru
          _
        // Predicated region
        $region21: #{tpu_custom_call.1} parent=15 // pred_check
          %p227 = pneg %p96
        $region22: #{tpu_custom_call.1} parent=15 // pred_check_branch
          %229 = sbr.rel (%p227) target = $region24
        $region23: #{tpu_custom_call.1} parent=15 // pred_region
          %s230 = sand.u32 %s86, 1
          %s231 = scalar_lea.sflag [#allocation6], %s230
          %s232 = sand.u32 %s86, 1
          %s233 = smul.addr %s232, 8
          %s234 = scalar_lea.vmem [#allocation5], %s233
          %s235 = sadd.s32 %s30, %s32
          %s236 = smul.u32 2, %s235
          %s238 = ssub.s32 128, 128
          %239 = vsyncadd %s231, %s238
          %s240 = smul.addr %s31, 2
          %s241 = sadd.s32 %s236, %s240
          %s242 = smul.addr %s241, 64
          %s243 = scalar_lea.hbm %s1, %s242
          %s245 = sshll.u32 %s234, 4
          %s246 = int_to_ptr.vmem [resolvable:$true] %s245
          %248 = dma.hbm_to_vmem [thread:$0]  %s243, 128, %s246, %s231
        $region24: #{tpu_custom_call.1} parent=15 // pred_fallthru
          _
      $region16: #{tpu_custom_call.1} parent=5 // pred_fallthru
        _
      %p249 = scmp.le.s32.totalorder 1, %s23
      %p250 = scmp.lt.s32.totalorder %s23, 3
      %p251 = pnand %p249, %p250
      %p252 = pneg %p251
      // Predicated region
      $region25: #{tpu_custom_call.1} parent=5 // pred_check
        _
      $region26: #{tpu_custom_call.1} parent=5 // pred_check_branch
        %254 = sbr.rel (%p251) target = $region28
      $region27: #{tpu_custom_call.1} parent=5 // pred_region
        %s255 = ssub.s32 %s23, 1
        %s256 = sand.u32 %s59, 1
        %s257 = scalar_lea.sflag [#allocation3], %s256
        %s258 = sand.u32 %s59, 1
        %s259 = smul.addr %s258, 8
        %s260 = scalar_lea.vmem [#allocation2], %s259
        // Predicated region
        $region29: #{tpu_custom_call.1} parent=27 // pred_check
          %p261 = pneg %p72
        $region30: #{tpu_custom_call.1} parent=27 // pred_check_branch
          %263 = sbr.rel (%p261) target = $region32
        $region31: #{tpu_custom_call.1} parent=27 // pred_region
          %264 = dma.done %s257, 128
        $region32: #{tpu_custom_call.1} parent=27 // pred_fallthru
          _
        %s265 = sand.u32 %s89, 1
        %s266 = scalar_lea.sflag [#allocation6], %s265
        %s267 = sand.u32 %s89, 1
        %s268 = smul.addr %s267, 8
        %s269 = scalar_lea.vmem [#allocation5], %s268
        // Predicated region
        $region33: #{tpu_custom_call.1} parent=27 // pred_check
          %p270 = pneg %p102
        $region34: #{tpu_custom_call.1} parent=27 // pred_check_branch
          %272 = sbr.rel (%p270) target = $region36
        $region35: #{tpu_custom_call.1} parent=27 // pred_region
          %273 = dma.done %s266, 128
        $region36: #{tpu_custom_call.1} parent=27 // pred_fallthru
          _
        %s274 = sand.u32 %s59, 1
        %s275 = scalar_lea.sflag [#allocation3], %s274
        %s276 = sand.u32 %s59, 1
        %s277 = smul.addr %s276, 8
        %s278 = scalar_lea.vmem [#allocation2], %s277
        %p279 = pneg %p72
        %p280 = pneg %p69
        %s281 = sand.u32 %s89, 1
        %s282 = scalar_lea.sflag [#allocation6], %s281
        %s283 = sand.u32 %s89, 1
        %s284 = smul.addr %s283, 8
        %s285 = scalar_lea.vmem [#allocation5], %s284
        %p286 = pneg %p102
        %p287 = pneg %p99
        %p288 = pneg %p130
        %p289 = pneg %p127
        %s290 = sand.u32 %s117, 1
        %s291 = scalar_lea.sflag [#allocation4], %s290
        %s292 = sand.u32 %s117, 1
        %s293 = smul.addr %s292, 4
        %s294 = scalar_lea.vmem [#allocation7], %s293
        %p295 = pneg %p158
        %p296 = pneg %p155
        %s297 = sand.u32 %s28, 1
        %s298 = scalar_lea.sflag [#allocation9], %s297
        %s299 = sand.u32 %s145, 1
        %s300 = smul.addr %s299, 4
        %s301 = scalar_lea.vmem [#allocation8], %s300
        %p302 = pneg %p186
        %p303 = pneg %p183
        %s304 = sand.u32 %s28, 1
        %s305 = scalar_lea.sflag [#allocation9], %s304
        %s306 = sand.u32 %s173, 1
        %s307 = smul.addr %s306, 4
        %s308 = scalar_lea.vmem [#allocation10], %s307
        %s309 = sadd.s32 %s33, %s35
        %s310 = smul.u32 2, %s309
        %s311 = sadd.s32 %s33, %s35
        %s312 = smul.u32 2, %s311
        %p313 = scmp.eq.s32.totalorder %s35, 0
        // Predicated region
        $region37: #{tpu_custom_call.1} parent=27 // pred_check
          %p314 = pneg %p313
        $region38: #{tpu_custom_call.1} parent=27 // pred_check_branch
          %316 = sbr.rel (%p314) target = $region40
        $region39: #{tpu_custom_call.1} parent=27 // pred_region
          %317 = vst [vmem:[%s294] sm:$0xf] 0.0
          %318 = vst [vmem:[%s301] sm:$0xf] 0.0
          %319 = vst [vmem:[%s308] sm:$0xf] 0.0
        $region40: #{tpu_custom_call.1} parent=27 // pred_fallthru
          _
        %v320 = vld [vmem:[%s260] sm:$0xff]
        %v321 = vld [vmem:[%s269] sm:$0xff]
        %v323 = vcombine.high %v320, %v320
        %vm325 = vcmask 1043456
        %v326 = vsel %vm325, %v320, -inf
        %v327 = vrot.slane %v326, 4
        %v328 = vmax.f32 %v326, %v327
        %v329 = vrot.slane %v328, 2
        %v330 = vmax.f32 %v328, %v329
        %v331 = vrot.slane %v330, 1
        %v332 = vmax.f32 %v330, %v331
        %v333 = vsel %vm325, %v323, -inf
        %v334 = vrot.slane %v333, 4
        %v335 = vmax.f32 %v333, %v334
        %v336 = vrot.slane %v335, 2
        %v337 = vmax.f32 %v335, %v336
        %v338 = vrot.slane %v337, 1
        %v339 = vmax.f32 %v337, %v338
        %v342 = vcombine.low %v332, %v339
        %v344 = vsub.f32 %v320, %v342
        %v345 = vmul.f32 %v344, 1.442695
        %v346 = vpow.pop %v345
        %v348 = vcombine.high %v346, %v346
        %v350 = vsel %vm325, %v346, 0.0
        %v351 = vrot.slane %v350, 4
        %v352 = vadd.f32 %v350, %v351
        %v353 = vrot.slane %v352, 2
        %v354 = vadd.f32 %v352, %v353
        %v355 = vrot.slane %v354, 1
        %v356 = vadd.f32 %v354, %v355
        %v357 = vsel %vm325, %v348, 0.0
        %v358 = vrot.slane %v357, 4
        %v359 = vadd.f32 %v357, %v358
        %v360 = vrot.slane %v359, 2
        %v361 = vadd.f32 %v359, %v360
        %v362 = vrot.slane %v361, 1
        %v363 = vadd.f32 %v361, %v362
        %v364 = vrcp.pop %v356
        %v365 = vrcp.pop %v363
        %v368 = vcombine.low %v364, %v365
        %v370 = vmul.f32 %v346, %v368
        %v371 = vmul.f32 %v321, %v370
        %v373 = vrot.slane %v371, 4
        %v375 = vadd.f32 %v371, %v373
        %v376 = vadd.f32 %v375, 0.0
        %v378 = vrot.slane %v321, 4
        %v380 = vadd.f32 %v321, %v378
        %v381 = vadd.f32 %v380, 0.0
        %v383 = vrot.slane %v370, 4
        %v385 = vadd.f32 %v370, %v383
        %v386 = vadd.f32 %v385, 0.0
        %v387 = vld [vmem:[%s294] sm:$0xf]
        %v388 = vadd.f32 %v387, %v376
        %389 = vst [vmem:[%s294] sm:$0xf] %v388
        %v390 = vld [vmem:[%s301] sm:$0xf]
        %v391 = vadd.f32 %v390, %v381
        %392 = vst [vmem:[%s301] sm:$0xf] %v391
        %v393 = vld [vmem:[%s308] sm:$0xf]
        %v394 = vadd.f32 %v393, %v386
        %395 = vst [vmem:[%s308] sm:$0xf] %v394
        %s396 = sand.u32 %s117, 1
        %s397 = scalar_lea.sflag [#allocation4], %s396
        %s398 = sand.u32 %s117, 1
        %s399 = smul.addr %s398, 4
        %s400 = scalar_lea.vmem [#allocation7], %s399
        %s401 = sand.u32 %s28, 1
        %s402 = scalar_lea.sflag [#allocation9], %s401
        %s403 = sand.u32 %s145, 1
        %s404 = smul.addr %s403, 4
        %s405 = scalar_lea.vmem [#allocation8], %s404
        %s406 = sand.u32 %s28, 1
        %s407 = scalar_lea.sflag [#allocation9], %s406
        %s408 = sand.u32 %s173, 1
        %s409 = smul.addr %s408, 4
        %s410 = scalar_lea.vmem [#allocation10], %s409
        // Predicated region
        $region41: #{tpu_custom_call.1} parent=27 // pred_check
          %p411 = pneg %p127
        $region42: #{tpu_custom_call.1} parent=27 // pred_check_branch
          %413 = sbr.rel (%p411) target = $region44
        $region43: #{tpu_custom_call.1} parent=27 // pred_region
          %s415 = ssub.s32 64, 64
          %416 = vsyncadd %s397, %s415
          %s417 = smul.addr %s33, 2
          %s418 = sadd.s32 %s34, %s417
          %s419 = smul.addr %s418, 64
          %s420 = scalar_lea.hbm %s2, %s419
          %s422 = sshll.u32 %s400, 4
          %s423 = int_to_ptr.vmem [resolvable:$true] %s422
          %425 = dma.vmem_to_hbm [thread:$0]  %s423, 64, %s420, %s397
        $region44: #{tpu_custom_call.1} parent=27 // pred_fallthru
          _
        // Predicated region
        $region45: #{tpu_custom_call.1} parent=27 // pred_check
          %p426 = pneg %p155
        $region46: #{tpu_custom_call.1} parent=27 // pred_check_branch
          %428 = sbr.rel (%p426) target = $region48
        $region47: #{tpu_custom_call.1} parent=27 // pred_region
          %s430 = ssub.s32 64, 64
          %431 = vsyncadd %s402, %s430
          %s432 = smul.addr %s33, 2
          %s433 = sadd.s32 %s34, %s432
          %s434 = smul.addr %s433, 64
          %s435 = scalar_lea.hbm %s3, %s434
          %s437 = sshll.u32 %s405, 4
          %s438 = int_to_ptr.vmem [resolvable:$true] %s437
          %440 = dma.vmem_to_hbm [thread:$0]  %s438, 64, %s435, %s402
        $region48: #{tpu_custom_call.1} parent=27 // pred_fallthru
          _
        // Predicated region
        $region49: #{tpu_custom_call.1} parent=27 // pred_check
          %p441 = pneg %p183
        $region50: #{tpu_custom_call.1} parent=27 // pred_check_branch
          %443 = sbr.rel (%p441) target = $region52
        $region51: #{tpu_custom_call.1} parent=27 // pred_region
          %s445 = ssub.s32 64, 64
          %446 = vsyncadd %s407, %s445
          %s447 = smul.addr %s33, 2
          %s448 = sadd.s32 %s34, %s447
          %s449 = smul.addr %s448, 64
          %s450 = scalar_lea.hbm %s4, %s449
          %s452 = sshll.u32 %s410, 4
          %s453 = int_to_ptr.vmem [resolvable:$true] %s452
          %455 = dma.vmem_to_hbm [thread:$0]  %s453, 64, %s450, %s407
        $region52: #{tpu_custom_call.1} parent=27 // pred_fallthru
          _
      $region28: #{tpu_custom_call.1} parent=5 // pred_fallthru
        _
      %p456 = scmp.le.s32.totalorder 2, %s23
      // Predicated region
      $region53: #{tpu_custom_call.1} parent=5 // pred_check
        %p457 = pneg %p456
      $region54: #{tpu_custom_call.1} parent=5 // pred_check_branch
        %459 = sbr.rel (%p457) target = $region56
      $region55: #{tpu_custom_call.1} parent=5 // pred_region
        %s460 = ssub.s32 %s23, 2
        // Predicated region
        $region57: #{tpu_custom_call.1} parent=55 // pred_check
          %p461 = pneg %p133
        $region58: #{tpu_custom_call.1} parent=55 // pred_check_branch
          %463 = sbr.rel (%p461) target = $region60
        $region59: #{tpu_custom_call.1} parent=55 // pred_region
          %s464 = sand.u32 %s118, 1
          %s465 = scalar_lea.sflag [#allocation4], %s464
          %s466 = sand.u32 %s118, 1
          %s467 = smul.addr %s466, 4
          %s468 = scalar_lea.vmem [#allocation7], %s467
          %469 = dma.done %s465, 64
        $region60: #{tpu_custom_call.1} parent=55 // pred_fallthru
          _
        // Predicated region
        $region61: #{tpu_custom_call.1} parent=55 // pred_check
          %p470 = pneg %p161
        $region62: #{tpu_custom_call.1} parent=55 // pred_check_branch
          %472 = sbr.rel (%p470) target = $region64
        $region63: #{tpu_custom_call.1} parent=55 // pred_region
          %s473 = sand.u32 %s29, 1
          %s474 = scalar_lea.sflag [#allocation9], %s473
          %s475 = sand.u32 %s146, 1
          %s476 = smul.addr %s475, 4
          %s477 = scalar_lea.vmem [#allocation8], %s476
          %478 = dma.done %s474, 64
        $region64: #{tpu_custom_call.1} parent=55 // pred_fallthru
          _
        // Predicated region
        $region65: #{tpu_custom_call.1} parent=55 // pred_check
          %p479 = pneg %p189
        $region66: #{tpu_custom_call.1} parent=55 // pred_check_branch
          %481 = sbr.rel (%p479) target = $region68
        $region67: #{tpu_custom_call.1} parent=55 // pred_region
          %s482 = sand.u32 %s29, 1
          %s483 = scalar_lea.sflag [#allocation9], %s482
          %s484 = sand.u32 %s174, 1
          %s485 = smul.addr %s484, 4
          %s486 = scalar_lea.vmem [#allocation10], %s485
          %487 = dma.done %s483, 64
        $region68: #{tpu_custom_call.1} parent=55 // pred_fallthru
          _
      $region56: #{tpu_custom_call.1} parent=5 // pred_fallthru
        _
    $region6: #{tpu_custom_call.1} parent=1 // loop_footer
      %s27 = sadd.s32 1, %s23
    $region7: #{tpu_custom_call.1} parent=1 // loop_footer_branch
      %22 = sbr.rel target = $region3
    $region8: #{tpu_custom_call.1} parent=1 // loop_exit
      _
    %488 = vsyncpa [#allocation3], 1
    %s489 = scalar_lea.sflag [#allocation3], 1
    %490 = vsyncpa %s489, 1
    %491 = vsyncpa [#allocation6], 1
    %s492 = scalar_lea.sflag [#allocation6], 1
    %493 = vsyncpa %s492, 1
    %494 = vsyncpa [#allocation4], 1
    %s495 = scalar_lea.sflag [#allocation4], 1
    %496 = vsyncpa %s495, 1
    %497 = vsyncpa [#allocation9], 1
    %s498 = scalar_lea.sflag [#allocation9], 1
    %499 = vsyncpa %s498, 1

</llo_original>
